<compile_context>
chip_gen: v7x
topology: tpu7x:2x2x1
jax: 0.10.0
libtpu: 0.0.40
codegen_flags: <defaults>
</compile_context>

<pallas_src>
import functools
import math

import jax
import jax.numpy as jnp
from jax.experimental import pallas as pl
from jax.experimental.pallas import tpu as pltpu

IN_FEATURES = 300 * 2   # 600, fixed by the module
OUT_FEATURES = 18       # fixed by the module
LANE = 128              # lane-dense padded output width


def _round_up(a: int, m: int) -> int:
    return ((a + m - 1) // m) * m


def linear_sigmoid_kernel(x_ref, w_ref, b_ref, o_ref):
    # (tb, 600) @ (600, 128) -> f32 accumulate on the MXU.
    z = jnp.dot(x_ref[...], w_ref[...], preferred_element_type=jnp.float32)
    z = z + b_ref[...]                                   # (tb,128) + (1,128)
    o_ref[...] = jax.nn.sigmoid(z).astype(o_ref.dtype)   # exp -> EUP slot


def prepare_params(weight, bias, compute_dtype=jnp.float32):
    """One-time (model-load) repack of nn.Linear params to lane-dense layout.

    weight: (18, 600) PyTorch nn.Linear layout -> (600, 128) zero-padded W^T
    bias:   (18,)                              -> (1, 128) f32 zero-padded
    Call this once and reuse the results for every forward call.
    """
    out_f, in_f = weight.shape
    w_packed = jnp.zeros((in_f, LANE), compute_dtype).at[:, :out_f].set(
        weight.T.astype(compute_dtype))
    b_packed = jnp.zeros((1, LANE), jnp.float32).at[:, :out_f].set(
        jnp.reshape(bias, (1, out_f)).astype(jnp.float32))
    return w_packed, b_packed


@functools.partial(jax.jit, static_argnames=("tb_max", "out_dtype"))
def nlp_model_forward(x, w_packed, b_packed, *, tb_max: int = 1024,
                      out_dtype=jnp.float32):
    """sigmoid(x @ weight.T + bias) using pre-packed params.

    x:        (B, 600), ideally already in w_packed.dtype (no hot-path cast)
    w_packed: (600, 128) from prepare_params
    b_packed: (1, 128)  f32 from prepare_params
    returns   (B, 18) in out_dtype
    """
    B, in_f = x.shape
    compute_dtype = w_packed.dtype
    if x.dtype != compute_dtype:
        # Prefer supplying x already in compute_dtype from the producer.
        x = x.astype(compute_dtype)

    # Sublane granularity: bf16/f16 pack 16 rows per vreg group, f32 packs 8.
    min_sub = 16 if jnp.dtype(compute_dtype).itemsize == 2 else 8

    if B <= 4 * min_sub:
        tb = B                          # single block equal to the full batch dim
    else:
        # Aim for >= 2 grid steps (v7x megacore), capped at tb_max.
        half = (B + 1) // 2
        tb = max(min(tb_max, _round_up(half, min_sub)), min_sub)
    grid = (pl.cdiv(B, tb),)            # ragged tail handled by Pallas; no jnp.pad

    itemsize = jnp.dtype(compute_dtype).itemsize
    out_itemsize = jnp.dtype(out_dtype).itemsize
    cost = pl.CostEstimate(
        flops=2 * B * in_f * OUT_FEATURES,
        transcendentals=B * OUT_FEATURES,
        bytes_accessed=(B * in_f * itemsize            # x stream
                        + in_f * LANE * itemsize       # resident weight
                        + LANE * 4                     # resident bias
                        + B * LANE * out_itemsize),    # output writeback
    )

    out_padded = pl.pallas_call(
        linear_sigmoid_kernel,
        out_shape=jax.ShapeDtypeStruct((B, LANE), out_dtype),
        grid_spec=pltpu.PrefetchScalarGridSpec(
            num_scalar_prefetch=0,
            grid=grid,
            in_specs=[
                pl.BlockSpec((tb, in_f), lambda i: (i, 0)),     # x tile
                pl.BlockSpec((in_f, LANE), lambda i: (0, 0)),   # resident weight
                pl.BlockSpec((1, LANE), lambda i: (0, 0)),      # resident bias
            ],
            out_specs=pl.BlockSpec((tb, LANE), lambda i: (i, 0)),
        ),
        compiler_params=pltpu.CompilerParams(
            dimension_semantics=("parallel",),
        ),
        cost_estimate=cost,
    )(x, w_packed, b_packed)

    # Strip only the lane padding (18 real features of the 128-wide slab).
    # TODO(synk): if a downstream consumer can take the lane-padded slab, skip
    # this slice entirely and fuse it there.
    return out_padded[:, :OUT_FEATURES]


if __name__ == "__main__":
    key = jax.random.PRNGKey(0)
    k_x, k_w, k_b, k_x2, k_x3 = jax.random.split(key, 5)

    # Deterministic synthetic parameters (PyTorch-style uniform fan-in init).
    bound = 1.0 / math.sqrt(IN_FEATURES)
    weight = jax.random.uniform(k_w, (OUT_FEATURES, IN_FEATURES),
                                jnp.float32, -bound, bound)
    bias = jax.random.uniform(k_b, (OUT_FEATURES,), jnp.float32, -bound, bound)

    # One-time parameter packing (model load), reused across all forward calls.
    w_f32, b_f32 = prepare_params(weight, bias, jnp.float32)
    w_bf16, _ = prepare_params(weight, bias, jnp.bfloat16)

    # Small batch (typical inference), f32: exact match to the reference.
    x = jax.random.normal(k_x, (16, IN_FEATURES), jnp.float32)
    ref = jax.nn.sigmoid(x @ weight.T + bias[None, :])
    out = jax.block_until_ready(nlp_model_forward(x, w_f32, b_f32))
    assert out.shape == (16, OUT_FEATURES)
    assert jnp.allclose(out, ref, atol=1e-5, rtol=1e-5)

    # Odd batch: single full-batch block, no padding anywhere.
    x_odd = jax.random.normal(k_x2, (13, IN_FEATURES), jnp.float32)
    ref_odd = jax.nn.sigmoid(x_odd @ weight.T + bias[None, :])
    out_odd = jax.block_until_ready(nlp_model_forward(x_odd, w_f32, b_f32))
    assert out_odd.shape == (13, OUT_FEATURES)
    assert jnp.allclose(out_odd, ref_odd, atol=1e-5, rtol=1e-5)

    # Larger batch: >=2 grid steps (v7x megacore) + ragged last block, no copy.
    x_big = jax.random.normal(k_x3, (200, IN_FEATURES), jnp.float32)
    ref_big = jax.nn.sigmoid(x_big @ weight.T + bias[None, :])
    out_big = jax.block_until_ready(nlp_model_forward(x_big, w_f32, b_f32))
    assert out_big.shape == (200, OUT_FEATURES)
    assert jnp.allclose(out_big, ref_big, atol=1e-5, rtol=1e-5)

    # bf16 path: caller supplies x already in bf16 (no wrapper-side convert),
    # f32 MXU accumulation, f32 output -> looser tolerance on the inputs only.
    x_bf16 = x.astype(jnp.bfloat16)
    out_bf16 = jax.block_until_ready(nlp_model_forward(x_bf16, w_bf16, b_f32))
    assert jnp.allclose(out_bf16.astype(jnp.float32), ref, atol=2e-2, rtol=2e-2)

    print("KERNEL_OK")
</pallas_src>

<mosaic_0001>
module attributes {stable_mosaic.version = 11 : i64} {
  func.func @linear_sigmoid_kernel(%arg0: i32, %arg1: memref<16x600xf32, #tpu.memory_space<vmem>>, %arg2: memref<600x128xf32, #tpu.memory_space<vmem>>, %arg3: memref<1x128xf32, #tpu.memory_space<vmem>>, %arg4: memref<16x128xf32, #tpu.memory_space<vmem>>) attributes {dimension_semantics = [#tpu.dimension_semantics<parallel>], iteration_bounds = array<i64: 1>, scalar_prefetch = 0 : i64, scratch_operands = 0 : i64, tpu.core_type = #tpu.core_type<tc>, window_params = [{transform_indices = @transform_0, window_bounds = array<i64: 16, 600>}, {pipeline_mode = #tpu.pipeline_mode<synchronous>, transform_indices = @transform_1, window_bounds = array<i64: 600, 128>}, {pipeline_mode = #tpu.pipeline_mode<synchronous>, transform_indices = @transform_2, window_bounds = array<i64: 1, 128>}, {transform_indices = @transform_3, window_bounds = array<i64: 16, 128>}]} {
    %c0 = arith.constant 0 : index
    %c0_0 = arith.constant 0 : index
    %0 = vector.load %arg1[%c0, %c0_0] : memref<16x600xf32, #tpu.memory_space<vmem>>, vector<16x600xf32>
    %c0_1 = arith.constant 0 : index
    %c0_2 = arith.constant 0 : index
    %1 = vector.load %arg2[%c0_1, %c0_2] : memref<600x128xf32, #tpu.memory_space<vmem>>, vector<600x128xf32>
    %cst = arith.constant dense<0.000000e+00> : vector<16x128xf32>
    %2 = tpu.matmul %0, %1, %cst {dimension_numbers = #tpu.dot_dimension_numbers<[1], [0], [0], [1], [0, 0, 1, 1], [], []>} : vector<16x600xf32>, vector<600x128xf32>, vector<16x128xf32> -> vector<16x128xf32>
    %c0_3 = arith.constant 0 : index
    %c0_4 = arith.constant 0 : index
    %3 = vector.load %arg3[%c0_3, %c0_4] : memref<1x128xf32, #tpu.memory_space<vmem>>, vector<1x128xf32>
    %4 = vector.broadcast %3 : vector<1x128xf32> to vector<16x128xf32>
    %5 = arith.addf %2, %4 : vector<16x128xf32>
    %6 = arith.negf %5 : vector<16x128xf32>
    %7 = math.exp %6 : vector<16x128xf32>
    %cst_5 = arith.constant 1.000000e+00 : f32
    %8 = vector.broadcast %cst_5 : f32 to vector<16x128xf32>
    %9 = arith.addf %8, %7 : vector<16x128xf32>
    %10 = arith.divf %8, %9 : vector<16x128xf32>
    %c0_6 = arith.constant 0 : index
    %c0_7 = arith.constant 0 : index
    %11 = vector.load %arg4[%c0_6, %c0_7] : memref<16x128xf32, #tpu.memory_space<vmem>>, vector<16x128xf32>
    tpu.vector_store %arg4[%c0_6, %c0_7], %10 {strides = array<i32>} : memref<16x128xf32, #tpu.memory_space<vmem>>, vector<16x128xf32>,
    return
  }
  func.func @transform_0(%arg0: i32) -> (i32, i32) {
    %c0_i32 = arith.constant 0 : i32
    %c0_i32_0 = arith.constant 0 : i32
    return %arg0, %c0_i32 : i32, i32
  }
  func.func @transform_1(%arg0: i32) -> (i32, i32) {
    %c0_i32 = arith.constant 0 : i32
    %c0_i32_0 = arith.constant 0 : i32
    %c0_i32_1 = arith.constant 0 : i32
    return %c0_i32, %c0_i32_0 : i32, i32
  }
  func.func @transform_2(%arg0: i32) -> (i32, i32) {
    %c0_i32 = arith.constant 0 : i32
    %c0_i32_0 = arith.constant 0 : i32
    %c0_i32_1 = arith.constant 0 : i32
    return %c0_i32, %c0_i32_0 : i32, i32
  }
  func.func @transform_3(%arg0: i32) -> (i32, i32) {
    %c0_i32 = arith.constant 0 : i32
    %c0_i32_0 = arith.constant 0 : i32
    return %arg0, %c0_i32 : i32, i32
  }
}

</mosaic_0001>

<llo_original>
// kernel: nlp_model_forward.1
$region0: #{nlp_model_forward.1}
  #allocation0 [shape = 'u32[]', space=smem, size = 0x4, offset = 0x4, fixed_abs, tag = 'smem constant byte address 0x4 - core index']
  #allocation1 [shape = 'u32[144,128]{1,0:T(1,128)}', space=vmem, size = 0x12000, scoped, tag = 'internal scratch']
  %s0 = inlined_call_operand.hbm [shape: f32[16,600], index: 0, kind: input, shape index: {}]
  %s1 = inlined_call_operand.hbm [shape: f32[600,128], index: 1, kind: input, shape index: {}]
  %s2 = inlined_call_operand.vmem [shape: f32[1,128], index: 2, kind: input, shape index: {}]
  %s3 = inlined_call_operand.hbm [shape: f32[16,128], index: 3, kind: output, shape index: {}]
  %s4 = sld [smem:[#allocation0]]
  $region30: #{nlp_model_forward.1} parent=0
    _
  %s6 = ssub.s32 1, %s4
  %s7 = scalar_select 0, %s6, %s4
  $region1: #{nlp_model_forward.1} parent=0
    #allocation2 [shape = 'u8[40960]{0}', space=vmem, size = 0xa000, scoped, tag = 'input window, operand 0, single buffered']
    #allocation3 [shape = 's32[1]{0}', space=sflag, size = 0x4, scoped, tag = 'scoped memory for nlp_model_forward.1']
    #allocation4 [shape = 's32[1]{0}', space=sflag, size = 0x4, scoped, tag = 'scoped memory for nlp_model_forward.1']
    #allocation5 [shape = 'u8[307200]{0}', space=vmem, size = 0x4b000, scoped, tag = 'input window, operand 1, single buffered']
    #allocation6 [shape = 's32[1]{0}', space=sflag, size = 0x4, scoped, tag = 'scoped memory for nlp_model_forward.1']
    #allocation7 [shape = 'u8[8192]{0}', space=vmem, size = 0x2000, scoped, tag = 'output window, operand 0, single buffered']
    %8 = vsyncpa [#allocation3], 0
    %9 = vsyncpa [#allocation6], 0
    %10 = vsyncpa [#allocation4], 0
    // Predicated region
    $region2: #{nlp_model_forward.1} parent=1 // pred_check
      _
    $region3: #{nlp_model_forward.1} parent=1 // pred_check_branch
      %12 = sbr.rel (0) target = $region5
    $region4: #{nlp_model_forward.1} parent=1 // pred_region
      %s14 = ssub.s32 1280, 1280
      %15 = vsyncadd [#allocation3], %s14
      %s16 = sshll.u32 [#allocation2], 4
      %s17 = int_to_ptr.vmem [resolvable:$true] %s16
      %22 = dma.hbm_to_vmem [thread:$0]  %s0, 1280, %s17, [#allocation3], 640, 640, 40
    $region5: #{nlp_model_forward.1} parent=1 // pred_fallthru
      _
    // Predicated region
    $region6: #{nlp_model_forward.1} parent=1 // pred_check
      _
    $region7: #{nlp_model_forward.1} parent=1 // pred_check_branch
      %24 = sbr.rel (0) target = $region9
    $region8: #{nlp_model_forward.1} parent=1 // pred_region
      %s26 = ssub.s32 9600, 9600
      %27 = vsyncadd [#allocation6], %s26
      %s28 = sshll.u32 [#allocation5], 4
      %s29 = int_to_ptr.vmem [resolvable:$true] %s28
      %34 = dma.hbm_to_vmem [thread:$0]  %s1, 9600, %s29, [#allocation6], 128, 128, 8
    $region9: #{nlp_model_forward.1} parent=1 // pred_fallthru
      _
    // Predicated region
    $region10: #{nlp_model_forward.1} parent=1 // pred_check
      _
    $region11: #{nlp_model_forward.1} parent=1 // pred_check_branch
      %36 = sbr.rel (0) target = $region13
    $region12: #{nlp_model_forward.1} parent=1 // pred_region
      _
    $region13: #{nlp_model_forward.1} parent=1 // pred_fallthru
      _
    // Predicated region
    $region14: #{nlp_model_forward.1} parent=1 // pred_check
      _
    $region15: #{nlp_model_forward.1} parent=1 // pred_check_branch
      %38 = sbr.rel (0) target = $region17
    $region16: #{nlp_model_forward.1} parent=1 // pred_region
      %39 = dma.done [#allocation3], 1280
    $region17: #{nlp_model_forward.1} parent=1 // pred_fallthru
      _
    // Predicated region
    $region18: #{nlp_model_forward.1} parent=1 // pred_check
      _
    $region19: #{nlp_model_forward.1} parent=1 // pred_check_branch
      %41 = sbr.rel (0) target = $region21
    $region20: #{nlp_model_forward.1} parent=1 // pred_region
      %42 = dma.done [#allocation6], 9600
    $region21: #{nlp_model_forward.1} parent=1 // pred_fallthru
      _
    %v43 = vld [vmem:[#allocation2] sm:$0xff]
    %v44 = vld [vmem:[#allocation2 + $0x8] sm:$0xff]
    %v45 = vld [vmem:[#allocation2 + $0x10] sm:$0xff]
    %v46 = vld [vmem:[#allocation2 + $0x18] sm:$0xff]
    %v47 = vld [vmem:[#allocation2 + $0x20] sm:$0xff]
    %v48 = vld [vmem:[#allocation2 + $0x28] sm:$0xff]
    %v49 = vld [vmem:[#allocation2 + $0x30] sm:$0xff]
    %v50 = vld [vmem:[#allocation2 + $0x38] sm:$0xff]
    %v51 = vld [vmem:[#allocation2 + $0x40] sm:$0xff]
    %v52 = vld [vmem:[#allocation2 + $0x48] sm:$0xff]
    %v53 = vld [vmem:[#allocation5] sm:$0xff]
    %v54 = vld [vmem:[#allocation5 + $0x8] sm:$0xff]
    %v55 = vld [vmem:[#allocation5 + $0x10] sm:$0xff]
    %v56 = vld [vmem:[#allocation5 + $0x18] sm:$0xff]
    %v57 = vld [vmem:[#allocation5 + $0x20] sm:$0xff]
    %v58 = vld [vmem:[#allocation5 + $0x28] sm:$0xff]
    %v59 = vld [vmem:[#allocation5 + $0x30] sm:$0xff]
    %v60 = vld [vmem:[#allocation5 + $0x38] sm:$0xff]
    %v61 = vld [vmem:[#allocation5 + $0x40] sm:$0xff]
    %v62 = vld [vmem:[#allocation5 + $0x48] sm:$0xff]
    %v63 = vld [vmem:[#allocation5 + $0x50] sm:$0xff]
    %v64 = vld [vmem:[#allocation5 + $0x58] sm:$0xff]
    %v65 = vld [vmem:[#allocation5 + $0x60] sm:$0xff]
    %v66 = vld [vmem:[#allocation5 + $0x68] sm:$0xff]
    %v67 = vld [vmem:[#allocation5 + $0x70] sm:$0xff]
    %v68 = vld [vmem:[#allocation5 + $0x78] sm:$0xff]
    %v69 = vld [vmem:[#allocation5 + $0x80] sm:$0xff]
    %v70 = vld [vmem:[#allocation5 + $0x88] sm:$0xff]
    %v71 = vld [vmem:[#allocation5 + $0x90] sm:$0xff]
    %v72 = vld [vmem:[#allocation5 + $0x98] sm:$0xff]
    %v73 = vld [vmem:[#allocation5 + $0xa0] sm:$0xff]
    %v74 = vld [vmem:[#allocation5 + $0xa8] sm:$0xff]
    %v75 = vld [vmem:[#allocation5 + $0xb0] sm:$0xff]
    %v76 = vld [vmem:[#allocation5 + $0xb8] sm:$0xff]
    %v77 = vld [vmem:[#allocation5 + $0xc0] sm:$0xff]
    %v78 = vld [vmem:[#allocation5 + $0xc8] sm:$0xff]
    %v79 = vld [vmem:[#allocation5 + $0xd0] sm:$0xff]
    %v80 = vld [vmem:[#allocation5 + $0xd8] sm:$0xff]
    %v81 = vld [vmem:[#allocation5 + $0xe0] sm:$0xff]
    %v82 = vld [vmem:[#allocation5 + $0xe8] sm:$0xff]
    %v83 = vld [vmem:[#allocation5 + $0xf0] sm:$0xff]
    %v84 = vld [vmem:[#allocation5 + $0xf8] sm:$0xff]
    %v85 = vld [vmem:[#allocation5 + $0x100] sm:$0xff]
    %v86 = vld [vmem:[#allocation5 + $0x108] sm:$0xff]
    %v87 = vld [vmem:[#allocation5 + $0x110] sm:$0xff]
    %v88 = vld [vmem:[#allocation5 + $0x118] sm:$0xff]
    %v89 = vld [vmem:[#allocation5 + $0x120] sm:$0xff]
    %v90 = vld [vmem:[#allocation5 + $0x128] sm:$0xff]
    %v91 = vld [vmem:[#allocation5 + $0x130] sm:$0xff]
    %v92 = vld [vmem:[#allocation5 + $0x138] sm:$0xff]
    %v93 = vld [vmem:[#allocation5 + $0x140] sm:$0xff]
    %v94 = vld [vmem:[#allocation5 + $0x148] sm:$0xff]
    %v95 = vld [vmem:[#allocation5 + $0x150] sm:$0xff]
    %v96 = vld [vmem:[#allocation5 + $0x158] sm:$0xff]
    %v97 = vld [vmem:[#allocation5 + $0x160] sm:$0xff]
    %v98 = vld [vmem:[#allocation5 + $0x168] sm:$0xff]
    %v99 = vld [vmem:[#allocation5 + $0x170] sm:$0xff]
    %v100 = vld [vmem:[#allocation5 + $0x178] sm:$0xff]
    %v101 = vld [vmem:[#allocation5 + $0x180] sm:$0xff]
    %v102 = vld [vmem:[#allocation5 + $0x188] sm:$0xff]
    %v103 = vld [vmem:[#allocation5 + $0x190] sm:$0xff]
    %v104 = vld [vmem:[#allocation5 + $0x198] sm:$0xff]
    %v105 = vld [vmem:[#allocation5 + $0x1a0] sm:$0xff]
    %v106 = vld [vmem:[#allocation5 + $0x1a8] sm:$0xff]
    %v107 = vld [vmem:[#allocation5 + $0x1b0] sm:$0xff]
    %v108 = vld [vmem:[#allocation5 + $0x1b8] sm:$0xff]
    %v109 = vld [vmem:[#allocation5 + $0x1c0] sm:$0xff]
    %v110 = vld [vmem:[#allocation5 + $0x1c8] sm:$0xff]
    %v111 = vld [vmem:[#allocation5 + $0x1d0] sm:$0xff]
    %v112 = vld [vmem:[#allocation5 + $0x1d8] sm:$0xff]
    %v113 = vld [vmem:[#allocation5 + $0x1e0] sm:$0xff]
    %v114 = vld [vmem:[#allocation5 + $0x1e8] sm:$0xff]
    %v115 = vld [vmem:[#allocation5 + $0x1f0] sm:$0xff]
    %v116 = vld [vmem:[#allocation5 + $0x1f8] sm:$0xff]
    %v117 = vld [vmem:[#allocation5 + $0x200] sm:$0xff]
    %v118 = vld [vmem:[#allocation5 + $0x208] sm:$0xff]
    %v119 = vld [vmem:[#allocation5 + $0x210] sm:$0xff]
    %v120 = vld [vmem:[#allocation5 + $0x218] sm:$0xff]
    %v121 = vld [vmem:[#allocation5 + $0x220] sm:$0xff]
    %v122 = vld [vmem:[#allocation5 + $0x228] sm:$0xff]
    %v123 = vld [vmem:[#allocation5 + $0x230] sm:$0xff]
    %v124 = vld [vmem:[#allocation5 + $0x238] sm:$0xff]
    %v125 = vld [vmem:[#allocation5 + $0x240] sm:$0xff]
    %v126 = vld [vmem:[#allocation5 + $0x248] sm:$0xff]
    %v127 = vld [vmem:[#allocation5 + $0x250] sm:$0xff]
    %v128 = vld [vmem:[%s2] sm:$0x1]
    %v130 = vlaneseq
    %v131 = vshrl.u32 %v130, 7
    %v132 = vsub.s32 0, %v131
    %v133 = vrot.slane %v128, %v132
    %vm135 = vcmask 719872
    %v137 = vsel %vm135, %v47, 0
    %v140 = vsel %vm135, %v52, 0
    %142 = vmatprep.subr.mxu0 0.0
    %143 = vmatpush1.msra.mxu0 %v53
    %144 = vmatprep.subr.mxu0 0.0
    %145 = vmatpush1.msra.mxu0 %v54
    %146 = vmatprep.subr.mxu0 0.0
    %147 = vmatpush1.msra.mxu0 %v55
    %148 = vmatprep.subr.mxu0 0.0
    %149 = vmatpush1.msra.mxu0 %v56
    %150 = vmatprep.subr.mxu0 0.0
    %151 = vmatpush1.msra.mxu0 %v57
    %152 = vmatprep.subr.mxu0 0.0
    %153 = vmatpush1.msra.mxu0 %v58
    %154 = vmatprep.subr.mxu0 0.0
    %155 = vmatpush1.msra.mxu0 %v59
    %156 = vmatprep.subr.mxu0 0.0
    %157 = vmatpush1.msra.mxu0 %v60
    %158 = vmatprep.subr.mxu0 0.0
    %159 = vmatpush1.msra.mxu0 %v61
    %160 = vmatprep.subr.mxu0 0.0
    %161 = vmatpush1.msra.mxu0 %v62
    %162 = vmatprep.subr.mxu0 0.0
    %163 = vmatpush1.msra.mxu0 %v63
    %164 = vmatprep.subr.mxu0 0.0
    %165 = vmatpush1.msra.mxu0 %v64
    %166 = vmatprep.subr.mxu0 0.0
    %167 = vmatpush1.msra.mxu0 %v65
    %168 = vmatprep.subr.mxu0 0.0
    %169 = vmatpush1.msra.mxu0 %v66
    %170 = vmatprep.subr.mxu0 0.0
    %171 = vmatpush1.msra.mxu0 %v67
    %172 = vmatprep.subr.mxu0 0.0
    %173 = vmatpush1.msra.mxu0 %v68
    %174 = vmatprep.subr.mxu0 0.0
    %175 = vmatpush1.msra.mxu0 %v69
    %176 = vmatprep.subr.mxu0 0.0
    %177 = vmatpush1.msra.mxu0 %v70
    %178 = vmatprep.subr.mxu0 0.0
    %179 = vmatpush1.msra.mxu0 %v71
    %180 = vmatprep.subr.mxu0 0.0
    %181 = vmatpush1.msra.mxu0 %v72
    %182 = vmatprep.subr.mxu0 0.0
    %183 = vmatpush1.msra.mxu0 %v73
    %184 = vmatprep.subr.mxu0 0.0
    %185 = vmatpush1.msra.mxu0 %v74
    %186 = vmatprep.subr.mxu0 0.0
    %187 = vmatpush1.msra.mxu0 %v75
    %188 = vmatprep.subr.mxu0 0.0
    %189 = vmatpush1.msra.mxu0 %v76
    %190 = vmatprep.subr.mxu0 0.0
    %191 = vmatpush1.msra.mxu0 %v77
    %192 = vmatprep.subr.mxu0 0.0
    %193 = vmatpush1.msra.mxu0 %v78
    %194 = vmatprep.subr.mxu0 0.0
    %195 = vmatpush1.msra.mxu0 %v79
    %196 = vmatprep.subr.mxu0 0.0
    %197 = vmatpush1.msra.mxu0 %v80
    %198 = vmatprep.subr.mxu0 0.0
    %199 = vmatpush1.msra.mxu0 %v81
    %200 = vmatprep.subr.mxu0 0.0
    %201 = vmatpush1.msra.mxu0 %v82
    %202 = vmatprep.subr.mxu0 0.0
    %203 = vmatpush1.msra.mxu0 %v83
    %204 = vmatprep.subr.mxu0 0.0
    %205 = vmatpush1.msra.mxu0 %v84
    %206 = vmatprep.mubr.f32.mxu0 %v44
    %207 = vmatmul.mubr.f32.gmra.mrb[0].mxu0 %v43
    %v208 = vpop.f32.mrb[0].mxu0
    %v209 = vadd.f32 %v133, %v208
    %v210 = vpop.f32.mrb[0].mxu0
    %211 = vmatprep.mubr.f32.mxu0 %v49
    %212 = vmatmul.mubr.f32.gmra.mrb[0].mxu0 %v48
    %v213 = vpop.f32.mrb[0].mxu0
    %v214 = vadd.f32 %v133, %v213
    %v215 = vpop.f32.mrb[0].mxu0
    %216 = vdwg.mxu0
    %217 = vmatprep.subr.mxu0 0.0
    %218 = vmatpush1.msra.mxu0 %v85
    %219 = vmatprep.subr.mxu0 0.0
    %220 = vmatpush1.msra.mxu0 %v86
    %221 = vmatprep.subr.mxu0 0.0
    %222 = vmatpush1.msra.mxu0 %v87
    %223 = vmatprep.subr.mxu0 0.0
    %224 = vmatpush1.msra.mxu0 %v88
    %225 = vmatprep.subr.mxu0 0.0
    %226 = vmatpush1.msra.mxu0 %v89
    %227 = vmatprep.subr.mxu0 0.0
    %228 = vmatpush1.msra.mxu0 %v90
    %229 = vmatprep.subr.mxu0 0.0
    %230 = vmatpush1.msra.mxu0 %v91
    %231 = vmatprep.subr.mxu0 0.0
    %232 = vmatpush1.msra.mxu0 %v92
    %233 = vmatprep.subr.mxu0 0.0
    %234 = vmatpush1.msra.mxu0 %v93
    %235 = vmatprep.subr.mxu0 0.0
    %236 = vmatpush1.msra.mxu0 %v94
    %237 = vmatprep.subr.mxu0 0.0
    %238 = vmatpush1.msra.mxu0 %v95
    %239 = vmatprep.subr.mxu0 0.0
    %240 = vmatpush1.msra.mxu0 %v96
    %241 = vmatprep.subr.mxu0 0.0
    %242 = vmatpush1.msra.mxu0 %v97
    %243 = vmatprep.subr.mxu0 0.0
    %244 = vmatpush1.msra.mxu0 %v98
    %245 = vmatprep.subr.mxu0 0.0
    %246 = vmatpush1.msra.mxu0 %v99
    %247 = vmatprep.subr.mxu0 0.0
    %248 = vmatpush1.msra.mxu0 %v100
    %249 = vmatprep.subr.mxu0 0.0
    %250 = vmatpush1.msra.mxu0 %v101
    %251 = vmatprep.subr.mxu0 0.0
    %252 = vmatpush1.msra.mxu0 %v102
    %253 = vmatprep.subr.mxu0 0.0
    %254 = vmatpush1.msra.mxu0 %v103
    %255 = vmatprep.subr.mxu0 0.0
    %256 = vmatpush1.msra.mxu0 %v104
    %257 = vmatprep.subr.mxu0 0.0
    %258 = vmatpush1.msra.mxu0 %v105
    %259 = vmatprep.subr.mxu0 0.0
    %260 = vmatpush1.msra.mxu0 %v106
    %261 = vmatprep.subr.mxu0 0.0
    %262 = vmatpush1.msra.mxu0 %v107
    %263 = vmatprep.subr.mxu0 0.0
    %264 = vmatpush1.msra.mxu0 %v108
    %265 = vmatprep.subr.mxu0 0.0
    %266 = vmatpush1.msra.mxu0 %v109
    %267 = vmatprep.subr.mxu0 0.0
    %268 = vmatpush1.msra.mxu0 %v110
    %269 = vmatprep.subr.mxu0 0.0
    %270 = vmatpush1.msra.mxu0 %v111
    %271 = vmatprep.subr.mxu0 0.0
    %272 = vmatpush1.msra.mxu0 %v112
    %273 = vmatprep.subr.mxu0 0.0
    %274 = vmatpush1.msra.mxu0 %v113
    %275 = vmatprep.subr.mxu0 0.0
    %276 = vmatpush1.msra.mxu0 %v114
    %277 = vmatprep.subr.mxu0 0.0
    %278 = vmatpush1.msra.mxu0 %v115
    %279 = vmatprep.subr.mxu0 0.0
    %280 = vmatpush1.msra.mxu0 %v116
    %281 = vmatprep.mubr.f32.mxu0 %v46
    %282 = vmatmul.mubr.f32.gmra.mrb[0].mxu0 %v45
    %v283 = vpop.f32.mrb[0].mxu0
    %v284 = vadd.f32 %v209, %v283
    %v285 = vpop.f32.mrb[0].mxu0
    %286 = vmatprep.mubr.f32.mxu0 %v51
    %287 = vmatmul.mubr.f32.gmra.mrb[0].mxu0 %v50
    %v288 = vpop.f32.mrb[0].mxu0
    %v289 = vadd.f32 %v214, %v288
    %v290 = vpop.f32.mrb[0].mxu0
    %291 = vdwg.mxu0
    %292 = vmatprep.subr.mxu0 0.0
    %293 = vmatpush1.msra.mxu0 %v117
    %294 = vmatprep.subr.mxu0 0.0
    %295 = vmatpush1.msra.mxu0 %v118
    %296 = vmatprep.subr.mxu0 0.0
    %297 = vmatpush1.msra.mxu0 %v119
    %298 = vmatprep.subr.mxu0 0.0
    %299 = vmatpush1.msra.mxu0 %v120
    %300 = vmatprep.subr.mxu0 0.0
    %301 = vmatpush1.msra.mxu0 %v121
    %302 = vmatprep.subr.mxu0 0.0
    %303 = vmatpush1.msra.mxu0 %v122
    %304 = vmatprep.subr.mxu0 0.0
    %305 = vmatpush1.msra.mxu0 %v123
    %306 = vmatprep.subr.mxu0 0.0
    %307 = vmatpush1.msra.mxu0 %v124
    %308 = vmatprep.subr.mxu0 0.0
    %309 = vmatpush1.msra.mxu0 %v125
    %310 = vmatprep.subr.mxu0 0.0
    %311 = vmatpush1.msra.mxu0 %v126
    %312 = vmatprep.subr.mxu0 0.0
    %313 = vmatpush1.msra.mxu0 %v127
    %314 = vmatprep.subr.mxu0 0.0
    %315 = vmatpush1.msra.mxu0 0.0
    %316 = vmatprep.subr.mxu0 0.0
    %317 = vmatpush1.msra.mxu0 0.0
    %318 = vmatprep.subr.mxu0 0.0
    %319 = vmatpush1.msra.mxu0 0.0
    %320 = vmatprep.subr.mxu0 0.0
    %321 = vmatpush1.msra.mxu0 0.0
    %322 = vmatprep.subr.mxu0 0.0
    %323 = vmatpush1.msra.mxu0 0.0
    %324 = vmatprep.subr.mxu0 0.0
    %325 = vmatpush1.msra.mxu0 0.0
    %326 = vmatprep.subr.mxu0 0.0
    %327 = vmatpush1.msra.mxu0 0.0
    %328 = vmatprep.subr.mxu0 0.0
    %329 = vmatpush1.msra.mxu0 0.0
    %330 = vmatprep.subr.mxu0 0.0
    %331 = vmatpush1.msra.mxu0 0.0
    %332 = vmatprep.subr.mxu0 0.0
    %333 = vmatpush1.msra.mxu0 0.0
    %334 = vmatprep.subr.mxu0 0.0
    %335 = vmatpush1.msra.mxu0 0.0
    %336 = vmatprep.subr.mxu0 0.0
    %337 = vmatpush1.msra.mxu0 0.0
    %338 = vmatprep.subr.mxu0 0.0
    %339 = vmatpush1.msra.mxu0 0.0
    %340 = vmatprep.subr.mxu0 0.0
    %341 = vmatpush1.msra.mxu0 0.0
    %342 = vmatprep.subr.mxu0 0.0
    %343 = vmatpush1.msra.mxu0 0.0
    %344 = vmatprep.subr.mxu0 0.0
    %345 = vmatpush1.msra.mxu0 0.0
    %346 = vmatprep.subr.mxu0 0.0
    %347 = vmatpush1.msra.mxu0 0.0
    %348 = vmatprep.subr.mxu0 0.0
    %349 = vmatpush1.msra.mxu0 0.0
    %350 = vmatprep.subr.mxu0 0.0
    %351 = vmatpush1.msra.mxu0 0.0
    %352 = vmatprep.subr.mxu0 0.0
    %353 = vmatpush1.msra.mxu0 0.0
    %354 = vmatprep.subr.mxu0 0.0
    %355 = vmatpush1.msra.mxu0 0.0
    %356 = vmatprep.mubr.f32.mxu0 0.0
    %357 = vmatmul.mubr.f32.gmra.mrb[0].mxu0 %v137
    %v358 = vpop.f32.mrb[0].mxu0
    %v359 = vadd.f32 %v284, %v358
    %v360 = vpop.f32.mrb[0].mxu0
    %361 = vmatprep.mubr.f32.mxu0 0.0
    %362 = vmatmul.mubr.f32.gmra.mrb[0].mxu0 %v140
    %v363 = vpop.f32.mrb[0].mxu0
    %v364 = vadd.f32 %v289, %v363
    %v365 = vpop.f32.mrb[0].mxu0
    %366 = vdwg.mxu0
    %v367 = vxor.u32 %v359, 2147483648
    %v368 = vxor.u32 %v364, 2147483648
    %v369 = vmul.f32 %v367, 1.442695
    %v370 = vpow.pop %v369
    %v371 = vmul.f32 %v368, 1.442695
    %v372 = vpow.pop %v371
    %v373 = vadd.f32 %v370, 1.0
    %v374 = vadd.f32 %v372, 1.0
    %v375 = vrcp.pop %v373
    %v376 = vmul.f32 1.0, %v375
    %v377 = vrcp.pop %v374
    %v378 = vmul.f32 1.0, %v377
    %379 = vst [vmem:[#allocation7] sm:$0xff] %v376
    %380 = vst [vmem:[#allocation7 + $0x8] sm:$0xff] %v378
    // Predicated region
    $region22: #{nlp_model_forward.1} parent=1 // pred_check
      _
    $region23: #{nlp_model_forward.1} parent=1 // pred_check_branch
      %382 = sbr.rel (0) target = $region25
    $region24: #{nlp_model_forward.1} parent=1 // pred_region
      %s384 = ssub.s32 256, 256
      %385 = vsyncadd [#allocation4], %s384
      %s386 = sshll.u32 [#allocation7], 4
      %s387 = int_to_ptr.vmem [resolvable:$true] %s386
      %392 = dma.vmem_to_hbm [thread:$0]  %s387, 256, %s3, [#allocation4], 128, 128, 8
    $region25: #{nlp_model_forward.1} parent=1 // pred_fallthru
      _
    // Predicated region
    $region26: #{nlp_model_forward.1} parent=1 // pred_check
      _
    $region27: #{nlp_model_forward.1} parent=1 // pred_check_branch
      %394 = sbr.rel (0) target = $region29
    $region28: #{nlp_model_forward.1} parent=1 // pred_region
      %395 = dma.done [#allocation4], 256
    $region29: #{nlp_model_forward.1} parent=1 // pred_fallthru
      _
    %396 = vsyncpa [#allocation3], 1
    %397 = vsyncpa [#allocation6], 1
    %398 = vsyncpa [#allocation4], 1

</llo_original>
